<compile_context>
chip_gen: v6e
topology: v6e:2x2x1
jax: 0.10.0
libtpu: 0.0.40
codegen_flags: <defaults>
</compile_context>

<pallas_src>
from types import SimpleNamespace

import jax
import jax.numpy as jnp
from jax.experimental import pallas as pl
from jax.experimental.pallas import tpu as pltpu


def _round_up(x, m):
    return (x + m - 1) // m * m


# ==========================================================================
# L1 loss: mean |x - y| over all elements (F.l1_loss).
# Lane-dense (rows, 512) tiling; one partial sum per grid step, reduced in JAX.
# ==========================================================================
_L1_LANES = 512      # lane-dense last dim (multiple of 128)
_L1_MAX_ROWS = 512   # rows per grid step  -> 1 MiB f32 per input block


def _l1_partial_kernel(x_ref, y_ref, o_ref):
    diff = x_ref[...].astype(jnp.float32) - y_ref[...].astype(jnp.float32)
    o_ref[0, 0] = jnp.sum(jnp.abs(diff))


def l1_loss_pallas(x, y):
    total = x.size
    rows_needed = -(-total // _L1_LANES)
    rows_blk = min(_L1_MAX_ROWS, _round_up(rows_needed, 8))
    rows_pad = _round_up(rows_needed, rows_blk)
    padded = rows_pad * _L1_LANES

    def to2d(a):
        flat = a.reshape(-1).astype(jnp.float32)
        flat = jnp.pad(flat, (0, padded - total))   # zero pad: |0-0| adds 0
        return flat.reshape(rows_pad, _L1_LANES)

    x2, y2 = to2d(x), to2d(y)
    num_blocks = rows_pad // rows_blk

    partial = pl.pallas_call(
        _l1_partial_kernel,
        out_shape=jax.ShapeDtypeStruct((num_blocks, 1), jnp.float32),
        grid=(num_blocks,),
        in_specs=[
            pl.BlockSpec((rows_blk, _L1_LANES), lambda i: (i, 0)),
            pl.BlockSpec((rows_blk, _L1_LANES), lambda i: (i, 0)),
        ],
        out_specs=pl.BlockSpec((1, 1), lambda i: (i, 0),
                               memory_space=pltpu.SMEM),
        compiler_params=pltpu.CompilerParams(
            dimension_semantics=("parallel",),
            vmem_limit_bytes=32 * 1024 * 1024),
    )(x2, y2)
    return jnp.sum(partial) / jnp.float32(total)


# ==========================================================================
# CoBi (contextual bilateral) loss kernel.
# Grid = (batch blocks, channel/K blocks).  Accumulate unnormalised Gram +
# sum(x^2), sum(y^2) across K; finalize (cosine dist -> relative dist ->
# contextual softmax -> combine with spatial CX -> max/mean) on last K step.
# ==========================================================================
def _make_cobi_kernel(b_blk, s, band_width, weight_sp, num_k, use_bf16):
    inv_bw = 1.0 / float(band_width)
    feat_scale = 1.0 - float(weight_sp)
    inv_s = 1.0 / float(s)

    def kernel(x_ref, y_ref, sp_ref, o_ref, gram_ref, xss_ref, yss_ref):
        k = pl.program_id(1)

        @pl.when(k == 0)
        def _():
            gram_ref[...] = jnp.zeros_like(gram_ref)
            xss_ref[...] = jnp.zeros_like(xss_ref)
            yss_ref[...] = jnp.zeros_like(yss_ref)

        xb = x_ref[...]                       # (B, S, Kb) f32
        yb = y_ref[...]                       # (B, Kb, S) f32
        if use_bf16:
            xm, ym = xb.astype(jnp.bfloat16), yb.astype(jnp.bfloat16)
        else:
            xm, ym = xb, yb

        # MXU-friendly contraction: LHS (S, Kb) x RHS (Kb, S), f32 accumulate.
        gram_ref[...] += jnp.einsum('bqc,bck->bqk', xm, ym,
                                    preferred_element_type=jnp.float32)
        xss_ref[...] += jnp.sum(xb * xb, axis=2, keepdims=True)   # (B, S, 1)
        yss_ref[...] += jnp.sum(yb * yb, axis=1, keepdims=True)   # (B, 1, S)

        @pl.when(k == num_k - 1)
        def _():
            # deferred F.normalize: sim = <x_i,y_j> / (max(||x_i||,1e-12) *
            #                                          max(||y_j||,1e-12))
            inv_xn = jax.lax.rsqrt(jnp.maximum(xss_ref[...], 1e-24))
            inv_yn = jax.lax.rsqrt(jnp.maximum(yss_ref[...], 1e-24))
            sim = gram_ref[...] * inv_xn * inv_yn                 # (B, S, S)
            dist = 1.0 - sim
            d_min = jnp.min(dist, axis=2, keepdims=True)          # over candidates
            d_tilde = dist * pl.reciprocal(d_min + 1e-5, approx=True)
            w = jnp.exp((1.0 - d_tilde) * inv_bw)
            row_sum = jnp.sum(w, axis=2, keepdims=True)
            cx_feat = w * pl.reciprocal(row_sum, approx=True)
            # sp_ref is pre-scaled by weight_sp in the wrapper.
            cx = feat_scale * cx_feat + sp_ref[...]
            k_max = jnp.max(cx, axis=2, keepdims=True)            # (B, S, 1)
            for bb in range(b_blk):
                o_ref[bb, 0] = jnp.sum(k_max[bb]) * inv_s
    return kernel


def _spatial_cx(hp, wp, band_width):
    """Input-independent spatial CX matrix (constant glue, computed in JAX)."""
    rows = jnp.arange(hp, dtype=jnp.float32) / (hp + 1)
    cols = jnp.arange(wp, dtype=jnp.float32) / (wp + 1)
    gy, gx = jnp.meshgrid(rows, cols, indexing="ij")
    grid = jnp.stack([gy, gx], axis=0).reshape(2, -1)                  # (2, S)
    d = jnp.sum((grid[:, :, None] - grid[:, None, :]) ** 2, axis=0)    # (S, S)
    d = jnp.maximum(d, 0.0)
    d_min = jnp.min(d, axis=1, keepdims=True)
    d_tilde = d / (d_min + 1e-5)
    w = jnp.exp((1.0 - d_tilde) / band_width)
    return w / jnp.sum(w, axis=1, keepdims=True)


def contextual_bilateral_loss_pallas(x_vec, y_vec, band_width=1.0,
                                     weight_sp=0.1):
    # x_vec, y_vec: (N, C', hp, wp) float32
    n, c, hp, wp = x_vec.shape
    s = hp * wp

    # mean-shift both by the channel-wise mean of y (reference CoBi).
    y_mu = jnp.mean(y_vec, axis=(0, 2, 3), keepdims=True)
    xc = (x_vec - y_mu).reshape(n, c, s)
    yc = (y_vec - y_mu).reshape(n, c, s)

    # --- K (channel) tiling: pad C' to a lane multiple, tile in <=512 chunks.
    k_blk_target = 512
    c_pad = _round_up(c, 128)
    if c_pad <= k_blk_target:
        k_blk = c_pad
    else:
        k_blk = k_blk_target
        c_pad = _round_up(c, k_blk)
    num_k = c_pad // k_blk

    # --- batch blocking: several batch elems per step; cap Gram scratch size.
    b_blk = min(n, 8)
    while b_blk > 1 and b_blk * s * s * 4 > 4 * 1024 * 1024:
        b_blk //= 2
    n_pad = _round_up(n, b_blk)
    num_b = n_pad // b_blk

    # LHS as (N, S, C) (lanes = channels), RHS as (N, C, S); zero padding on
    # channels/batch contributes nothing to the Gram/sum-of-squares.
    xs = jnp.transpose(xc, (0, 2, 1))
    xs = jnp.pad(xs, ((0, n_pad - n), (0, 0), (0, c_pad - c)))
    ys = jnp.pad(yc, ((0, n_pad - n), (0, c_pad - c), (0, 0)))

    cx_sp = (weight_sp * _spatial_cx(hp, wp, band_width)).astype(jnp.float32)

    use_bf16 = c >= 1024   # skip bf16 MXU path at toy channel counts

    per_batch_cx = pl.pallas_call(
        _make_cobi_kernel(b_blk, s, band_width, weight_sp, num_k, use_bf16),
        out_shape=jax.ShapeDtypeStruct((n_pad, 1), jnp.float32),
        grid=(num_b, num_k),
        in_specs=[
            pl.BlockSpec((b_blk, s, k_blk), lambda b, k: (b, 0, k)),
            pl.BlockSpec((b_blk, k_blk, s), lambda b, k: (b, k, 0)),
            pl.BlockSpec((s, s), lambda b, k: (0, 0)),
        ],
        out_specs=pl.BlockSpec((b_blk, 1), lambda b, k: (b, 0),
                               memory_space=pltpu.SMEM),
        scratch_shapes=[
            pltpu.VMEM((b_blk, s, s), jnp.float32),   # Gram accumulator
            pltpu.VMEM((b_blk, s, 1), jnp.float32),   # sum x^2 per position
            pltpu.VMEM((b_blk, 1, s), jnp.float32),   # sum y^2 per position
        ],
        compiler_params=pltpu.CompilerParams(
            dimension_semantics=("parallel", "arbitrary"),
            vmem_limit_bytes=32 * 1024 * 1024),
    )(xs, ys, cx_sp)

    cx = per_batch_cx[:n, 0]
    return jnp.mean(-jnp.log(cx + 1e-5))


# ==========================================================================
# Glue matching the PyTorch module structure.
# ==========================================================================
def sample_patches(x, patch_size, stride):
    """unfold-equivalent patch extraction -> (N, C, ps, ps, n_patches).

    One XLA op (grouped conv with an identity kernel) instead of a Python
    slice-and-stack loop; channel ordering is (c, i, j) major-to-minor and
    patches are in row-major (oh, ow) order, matching torch.nn.functional.unfold.
    """
    n, c, h, w = x.shape
    patches = jax.lax.conv_general_dilated_patches(
        x, filter_shape=(patch_size, patch_size),
        window_strides=(stride, stride), padding="VALID")
    nh, nw = patches.shape[2], patches.shape[3]
    return patches.reshape(n, c, patch_size, patch_size, nh * nw)


def cobi_rgb(output, target, args):
    n = output.shape[0]
    ps, st = args.cobi_rgb_patch_size, args.cobi_rgb_stride
    x_patch = sample_patches(output, ps, st)
    y_patch = sample_patches(target, ps, st)
    # Same row-major reshape semantics as torch .reshape(n, -1, ps, ps)
    # (interleaves patch and spatial axes exactly as the module's code does).
    x_vec = x_patch.reshape(n, -1, ps, ps)
    y_vec = y_patch.reshape(n, -1, ps, ps)
    return contextual_bilateral_loss_pallas(x_vec, y_vec)


def gloss_forward(output, target, args):
    """Mirror of GLoss.forward."""
    total_loss = jnp.float32(0.0)
    image_loss = jnp.float32(0.0)
    cobi_rgb_loss = jnp.float32(0.0)
    if args.lambda_image:
        image_loss = image_loss + l1_loss_pallas(output, target) * args.lambda_image
    if args.lambda_CoBi_RGB:
        cobi_rgb_loss = cobi_rgb_loss + cobi_rgb(output, target, args) * args.lambda_CoBi_RGB
    total_loss = total_loss + image_loss + cobi_rgb_loss
    return total_loss


if __name__ == "__main__":
    args = SimpleNamespace(
        lambda_image=1.0,
        lambda_CoBi_RGB=1.0,
        cobi_rgb_patch_size=8,
        cobi_rgb_stride=4,
    )
    key = jax.random.PRNGKey(0)
    k1, k2 = jax.random.split(key)
    output = jax.random.uniform(k1, (2, 3, 16, 16), dtype=jnp.float32)
    target = jax.random.uniform(k2, (2, 3, 16, 16), dtype=jnp.float32)

    loss = gloss_forward(output, target, args)
    jax.block_until_ready(loss)
    print("KERNEL_OK")
</pallas_src>

<mosaic_0001>
module attributes {stable_mosaic.version = 11 : i64} {
  func.func @_l1_partial_kernel(%arg0: i32, %arg1: memref<8x512xf32, #tpu.memory_space<vmem>>, %arg2: memref<8x512xf32, #tpu.memory_space<vmem>>, %arg3: memref<1x1xf32, #tpu.memory_space<smem>>) attributes {dimension_semantics = [#tpu.dimension_semantics<parallel>], iteration_bounds = array<i64: 1>, scalar_prefetch = 0 : i64, scratch_operands = 0 : i64, tpu.core_type = #tpu.core_type<tc>, window_params = [{transform_indices = @transform_0, window_bounds = array<i64: 8, 512>}, {transform_indices = @transform_1, window_bounds = array<i64: 8, 512>}, {transform_indices = @transform_2, window_bounds = array<i64: 1, 1>}]} {
    %c0 = arith.constant 0 : index
    %c0_0 = arith.constant 0 : index
    %0 = vector.load %arg1[%c0, %c0_0] : memref<8x512xf32, #tpu.memory_space<vmem>>, vector<8x512xf32>
    %c0_1 = arith.constant 0 : index
    %c0_2 = arith.constant 0 : index
    %1 = vector.load %arg2[%c0_1, %c0_2] : memref<8x512xf32, #tpu.memory_space<vmem>>, vector<8x512xf32>
    %2 = arith.subf %0, %1 : vector<8x512xf32>
    %3 = math.absf %2 : vector<8x512xf32>
    %4 = vector.shape_cast %3 : vector<8x512xf32> to vector<1x8x512xf32>
    %cst = arith.constant dense<0.000000e+00> : vector<1xf32>
    %5 = vector.multi_reduction <add>, %4, %cst [1, 2] : vector<1x8x512xf32> to vector<1xf32>
    %6 = vector.shape_cast %5 : vector<1xf32> to vector<1x1x1xf32>
    %7 = vector.extract %6[0, 0, 0] : f32 from vector<1x1x1xf32>
    %c0_3 = arith.constant 0 : index
    %c0_4 = arith.constant 0 : index
    %8 = memref.load %arg3[%c0_3, %c0_4] : memref<1x1xf32, #tpu.memory_space<smem>>
    memref.store %7, %arg3[%c0_3, %c0_4] : memref<1x1xf32, #tpu.memory_space<smem>>
    return
  }
  func.func @transform_0(%arg0: i32) -> (i32, i32) {
    %c0_i32 = arith.constant 0 : i32
    %c0_i32_0 = arith.constant 0 : i32
    return %arg0, %c0_i32 : i32, i32
  }
  func.func @transform_1(%arg0: i32) -> (i32, i32) {
    %c0_i32 = arith.constant 0 : i32
    %c0_i32_0 = arith.constant 0 : i32
    return %arg0, %c0_i32 : i32, i32
  }
  func.func @transform_2(%arg0: i32) -> (i32, i32) {
    %c0_i32 = arith.constant 0 : i32
    %c0_i32_0 = arith.constant 0 : i32
    return %arg0, %c0_i32 : i32, i32
  }
}

</mosaic_0001>

<llo_original>
// kernel: tpu_custom_call.1
$region0: #{tpu_custom_call.1}
  #allocation0 [shape = 'u32[]', space=smem, size = 0x4, offset = 0x4, fixed_abs, tag = 'smem constant byte address 0x4 - core index']
  #allocation1 [shape = 'u32[144,128]{1,0:T(1,128)}', space=vmem, size = 0x12000, scoped, tag = 'internal scratch']
  %s0 = inlined_call_operand.hbm [shape: f32[8,512], index: 0, kind: input, shape index: {}]
  %s1 = inlined_call_operand.hbm [shape: f32[8,512], index: 1, kind: input, shape index: {}]
  %s2 = inlined_call_operand.hbm [shape: f32[1,1], index: 2, kind: output, shape index: {}]
  %s3 = sld [smem:[#allocation0]]
  $region26: #{tpu_custom_call.1} parent=0
    _
  %s5 = ssub.s32 1, %s3
  %s6 = scalar_select 0, %s5, %s3
  $region1: #{tpu_custom_call.1} parent=0
    #allocation2 [shape = 'u8[16384]{0}', space=vmem, size = 0x4000, scoped, tag = 'input window, operand 0, single buffered']
    #allocation3 [shape = 's32[1]{0}', space=sflag, size = 0x4, scoped, tag = 'scoped memory for tpu_custom_call.1']
    #allocation4 [shape = 's32[1]{0}', space=sflag, size = 0x4, scoped, tag = 'scoped memory for tpu_custom_call.1']
    #allocation5 [shape = 'u8[16384]{0}', space=vmem, size = 0x4000, scoped, tag = 'input window, operand 1, single buffered']
    #allocation6 [shape = 's32[1]{0}', space=sflag, size = 0x4, scoped, tag = 'scoped memory for tpu_custom_call.1']
    #allocation7 [shape = 'u8[512]{0}', space=smem, size = 0x200, scoped, tag = 'output window, operand 0, single buffered']
    %7 = vsyncpa [#allocation3], 0
    %8 = vsyncpa [#allocation6], 0
    %9 = vsyncpa [#allocation4], 0
    // Predicated region
    $region2: #{tpu_custom_call.1} parent=1 // pred_check
      _
    $region3: #{tpu_custom_call.1} parent=1 // pred_check_branch
      %11 = sbr.rel (0) target = $region5
    $region4: #{tpu_custom_call.1} parent=1 // pred_region
      %s13 = ssub.s32 512, 512
      %14 = vsyncadd [#allocation3], %s13
      %s16 = sshll.u32 [#allocation2], 4
      %s17 = int_to_ptr.vmem [resolvable:$true] %s16
      %19 = dma.hbm_to_vmem [thread:$0]  %s0, 512, %s17, [#allocation3]
    $region5: #{tpu_custom_call.1} parent=1 // pred_fallthru
      _
    // Predicated region
    $region6: #{tpu_custom_call.1} parent=1 // pred_check
      _
    $region7: #{tpu_custom_call.1} parent=1 // pred_check_branch
      %21 = sbr.rel (0) target = $region9
    $region8: #{tpu_custom_call.1} parent=1 // pred_region
      %s23 = ssub.s32 512, 512
      %24 = vsyncadd [#allocation6], %s23
      %s26 = sshll.u32 [#allocation5], 4
      %s27 = int_to_ptr.vmem [resolvable:$true] %s26
      %29 = dma.hbm_to_vmem [thread:$0]  %s1, 512, %s27, [#allocation6]
    $region9: #{tpu_custom_call.1} parent=1 // pred_fallthru
      _
    // Predicated region
    $region10: #{tpu_custom_call.1} parent=1 // pred_check
      _
    $region11: #{tpu_custom_call.1} parent=1 // pred_check_branch
      %31 = sbr.rel (0) target = $region13
    $region12: #{tpu_custom_call.1} parent=1 // pred_region
      %32 = dma.done [#allocation3], 512
    $region13: #{tpu_custom_call.1} parent=1 // pred_fallthru
      _
    // Predicated region
    $region14: #{tpu_custom_call.1} parent=1 // pred_check
      _
    $region15: #{tpu_custom_call.1} parent=1 // pred_check_branch
      %34 = sbr.rel (0) target = $region17
    $region16: #{tpu_custom_call.1} parent=1 // pred_region
      %35 = dma.done [#allocation6], 512
    $region17: #{tpu_custom_call.1} parent=1 // pred_fallthru
      _
    %v36 = vld [vmem:[#allocation2] sm:$0xff]
    %v37 = vld [vmem:[#allocation2 + $0x8] sm:$0xff]
    %v38 = vld [vmem:[#allocation2 + $0x10] sm:$0xff]
    %v39 = vld [vmem:[#allocation2 + $0x18] sm:$0xff]
    %v40 = vld [vmem:[#allocation5] sm:$0xff]
    %v41 = vld [vmem:[#allocation5 + $0x8] sm:$0xff]
    %v42 = vld [vmem:[#allocation5 + $0x10] sm:$0xff]
    %v43 = vld [vmem:[#allocation5 + $0x18] sm:$0xff]
    %v44 = vsub.f32 %v36, %v40
    %v45 = vsub.f32 %v37, %v41
    %v46 = vsub.f32 %v38, %v42
    %v47 = vsub.f32 %v39, %v43
    %v48 = vand.u32 2147483647, %v44
    %v49 = vand.u32 2147483647, %v45
    %v50 = vand.u32 2147483647, %v46
    %v51 = vand.u32 2147483647, %v47
    %v52 = vadd.f32 %v48, %v49
    %v53 = vadd.f32 %v52, %v50
    %v54 = vadd.f32 %v53, %v51
    %55 = vadd.xlane.f32.xlu0 %v54
    %v56 = vpop.xlane.xlu0 %55
    %v57 = vrot.slane %v56, 4
    %v58 = vadd.f32 %v56, %v57
    %v59 = vrot.slane %v58, 2
    %v60 = vadd.f32 %v58, %v59
    %v61 = vrot.slane %v60, 1
    %v62 = vadd.f32 %v60, %v61
    %s63 = vtos %v62
    %s64 = scalar_lea.smem [#allocation7], 0
    %65 = sst [smem:[%s64]] %s63
    // Predicated region
    $region18: #{tpu_custom_call.1} parent=1 // pred_check
      _
    $region19: #{tpu_custom_call.1} parent=1 // pred_check_branch
      %67 = sbr.rel (0) target = $region21
    $region20: #{tpu_custom_call.1} parent=1 // pred_region
      %s69 = ssub.s32 16, 16
      %70 = vsyncadd [#allocation4], %s69
      %73 = dma.smem_to_hbm [#allocation7], 16, %s2, [#allocation4]
    $region21: #{tpu_custom_call.1} parent=1 // pred_fallthru
      _
    // Predicated region
    $region22: #{tpu_custom_call.1} parent=1 // pred_check
      _
    $region23: #{tpu_custom_call.1} parent=1 // pred_check_branch
      %75 = sbr.rel (0) target = $region25
    $region24: #{tpu_custom_call.1} parent=1 // pred_region
      %76 = dma.done [#allocation4], 16
    $region25: #{tpu_custom_call.1} parent=1 // pred_fallthru
      _
    %77 = sfence
    %78 = vsyncpa [#allocation3], 1
    %79 = vsyncpa [#allocation6], 1
    %80 = vsyncpa [#allocation4], 1

</llo_original>
